<compile_context>
chip_gen: v6e
topology: v6e:2x2x1
jax: 0.10.0
libtpu: 0.0.40
codegen_flags: <defaults>
</compile_context>

<pallas_src>
import jax
import jax.numpy as jnp
from jax import lax
from jax.experimental import pallas as pl
from jax.experimental.pallas import tpu as pltpu

_NEG = -1e30                      # finite "minus infinity": NaN-free softmax
_COMPUTE = jnp.bfloat16           # MXU operand / inter-kernel activation dtype
_VMEM_LIMIT = 64 * 1024 * 1024    # explicit scoped-VMEM budget (< v7x physical)


def _pick_tile(n, cap, align=32):
    """Largest tile <= cap that divides n and is a multiple of `align`
    (32 covers f32/bf16/int8 sublane packing); falls back to the full dim
    (always a legal block size)."""
    if n <= cap:
        return n
    t = (cap // align) * align
    while t >= align:
        if n % t == 0:
            return t
        t -= align
    return n


# ---------------------------------------------------------------------------
# Projection kernel: flat (N, Ein) @ (Ein, Eout) + bias, weight resident
# ---------------------------------------------------------------------------
def _matmul_bias_kernel(x_ref, w_ref, b_ref, o_ref):
    acc = jnp.dot(x_ref[...], w_ref[...], preferred_element_type=jnp.float32)
    o_ref[...] = (acc + b_ref[...]).astype(o_ref.dtype)


def matmul_bias(x, w, b, out_dtype, *, row_tile=512):
    """x:(N,Ein) bf16, w:(Ein,Eout) bf16, b:(1,Eout) f32 -> (N,Eout) out_dtype."""
    N, Ein = x.shape
    Eout = w.shape[1]
    tn = _pick_tile(N, row_tile)
    return pl.pallas_call(
        _matmul_bias_kernel,
        out_shape=jax.ShapeDtypeStruct((N, Eout), out_dtype),
        grid=(N // tn,),
        in_specs=[
            pl.BlockSpec((tn, Ein), lambda i: (i, 0)),
            pl.BlockSpec((Ein, Eout), lambda i: (0, 0)),   # weight resident
            pl.BlockSpec((1, Eout), lambda i: (0, 0)),     # bias resident
        ],
        out_specs=pl.BlockSpec((tn, Eout), lambda i: (i, 0)),
        compiler_params=pltpu.CompilerParams(
            dimension_semantics=("parallel",),
            vmem_limit_bytes=_VMEM_LIMIT),
    )(x, w, b)


# ---------------------------------------------------------------------------
# Attention core: grid = (batch, head, Sq tiles), full Sk per step
# ---------------------------------------------------------------------------
def _attn_kernel(q_ref, k_ref, v_ref, am_ref, kpm_ref, o_ref):
    # q:(tq,D) k/v:(Sk,D) bf16; am:(tq,Sk) int8; kpm:(1,Sk) int8; o:(tq,D)
    s = lax.dot_general(q_ref[...], k_ref[...],
                        dimension_numbers=(((1,), (1,)), ((), ())),
                        preferred_element_type=jnp.float32)       # (tq, Sk)
    masked = (am_ref[...] != 0) | (kpm_ref[...] != 0)             # VPU expand
    s = jnp.where(masked, _NEG, s)
    m = jnp.max(s, axis=-1, keepdims=True)
    p = jnp.exp(s - m)
    l = jnp.sum(p, axis=-1, keepdims=True)
    ctx = jnp.dot(p.astype(v_ref.dtype), v_ref[...],
                  preferred_element_type=jnp.float32)             # (tq, D)
    o_ref[...] = (ctx * pl.reciprocal(l, approx=True)).astype(o_ref.dtype)


def attention_core(q, k, v, attn_mask_i8, kpm_i8, *, q_tile=512):
    """q:(B,H,Sq,D), k/v:(B,H,Sk,D) bf16, attn_mask:(Sq,Sk) i8, kpm:(B,1,Sk) i8
    -> (B,H,Sq,D) bf16."""
    B, H, Sq, D = q.shape
    Sk = k.shape[2]
    tq = _pick_tile(Sq, q_tile)
    return pl.pallas_call(
        _attn_kernel,
        out_shape=jax.ShapeDtypeStruct((B, H, Sq, D), q.dtype),
        grid=(B, H, Sq // tq),
        in_specs=[
            pl.BlockSpec((None, None, tq, D), lambda b, h, i: (b, h, i, 0)),
            pl.BlockSpec((None, None, Sk, D), lambda b, h, i: (b, h, 0, 0)),
            pl.BlockSpec((None, None, Sk, D), lambda b, h, i: (b, h, 0, 0)),
            pl.BlockSpec((tq, Sk), lambda b, h, i: (i, 0)),       # shared mask
            pl.BlockSpec((None, 1, Sk), lambda b, h, i: (b, 0, 0)),
        ],
        out_specs=pl.BlockSpec((None, None, tq, D), lambda b, h, i: (b, h, i, 0)),
        compiler_params=pltpu.CompilerParams(
            dimension_semantics=("parallel", "parallel", "parallel"),
            vmem_limit_bytes=_VMEM_LIMIT),
    )(q, k, v, attn_mask_i8, kpm_i8)


# ---------------------------------------------------------------------------
# Module wrapper (parameters / glue in plain JAX)
# ---------------------------------------------------------------------------
class AttentionPallas:
    def __init__(self, embed_dim, num_heads, bias=True, seed=0):
        assert embed_dim % num_heads == 0
        self.embed_dim = embed_dim
        self.num_heads = num_heads
        self.head_dim = embed_dim // num_heads
        self.scaling = self.head_dim ** (-0.5)

        key = jax.random.PRNGKey(seed)
        ks = jax.random.split(key, 8)
        bound = 1.0 / (embed_dim ** 0.5)

        def w(k):  # torch Linear weight is (out, in); store transposed (in, out)
            return jax.random.uniform(
                k, (embed_dim, embed_dim), jnp.float32, -bound, bound
            ).T

        def b(k):
            if bias:
                return jax.random.uniform(k, (1, embed_dim), jnp.float32, -bound, bound)
            return jnp.zeros((1, embed_dim), jnp.float32)

        # raw f32 parameters (mirror the torch module; used by the reference)
        self.wq_t, self.bq = w(ks[0]), b(ks[1])
        self.wk_t, self.bk = w(ks[2]), b(ks[3])
        self.wv_t, self.bv = w(ks[4]), b(ks[5])
        self.wo_t, self.bo = w(ks[6]), b(ks[7])
        # dropout=0.0 in the reference module and never applied in forward().

        # kernel-facing parameters:
        #  * fold 1/sqrt(head_dim) into the Q projection
        #  * fuse K and V projections into one (E, 2E) matmul
        #  * bf16 MXU operands, f32 biases
        self.wq_k = (self.wq_t * self.scaling).astype(_COMPUTE)
        self.bq_k = self.bq * self.scaling
        self.wkv_k = jnp.concatenate([self.wk_t, self.wv_t], axis=1).astype(_COMPUTE)
        self.bkv_k = jnp.concatenate([self.bk, self.bv], axis=1)
        self.wo_k = self.wo_t.astype(_COMPUTE)
        self.bo_k = self.bo

    def __call__(self, query, key=None, key_padding_mask=None, attn_mask=None):
        if key is None:
            key = query
        Sq, B, E = query.shape
        Sk = key.shape[0]
        H, D = self.num_heads, self.head_dim

        # ---- projections as flat row-tiled matmuls (bf16 operands) ----
        q_flat = matmul_bias(query.astype(_COMPUTE).reshape(Sq * B, E),
                             self.wq_k, self.bq_k, _COMPUTE)          # (Sq*B, E)
        kv_flat = matmul_bias(key.astype(_COMPUTE).reshape(Sk * B, E),
                              self.wkv_k, self.bkv_k, _COMPUTE)       # (Sk*B, 2E)

        # ---- head-major layout so BlockSpec DMA slices heads for free ----
        q_bhsd = q_flat.reshape(Sq, B, H, D).transpose(1, 2, 0, 3)     # (B,H,Sq,D)
        kv = kv_flat.reshape(Sk, B, 2, H, D).transpose(2, 1, 3, 0, 4)  # (2,B,H,Sk,D)
        k_bhsd, v_bhsd = kv[0], kv[1]

        # ---- compact int8 masks (expanded on the VPU inside the kernel) ----
        # torch converts attn_mask to bool (hard mask), so int8 {0,1} matches.
        if attn_mask is not None:
            am_i8 = attn_mask.astype(bool).astype(jnp.int8)            # (Sq, Sk)
        else:
            am_i8 = jnp.zeros((Sq, Sk), jnp.int8)
        if key_padding_mask is not None:
            kpm_i8 = key_padding_mask.astype(bool).astype(jnp.int8).reshape(B, 1, Sk)
        else:
            kpm_i8 = jnp.zeros((B, 1, Sk), jnp.int8)

        # ---- fused scaled-QK^T + mask + softmax + PV per (batch, head) ----
        ctx = attention_core(q_bhsd, k_bhsd, v_bhsd, am_i8, kpm_i8)    # (B,H,Sq,D)

        # ---- output projection (back to seq-major f32) ----
        ctx_flat = ctx.transpose(2, 0, 1, 3).reshape(Sq * B, E)        # (Sq*B, E)
        out = matmul_bias(ctx_flat, self.wo_k, self.bo_k, jnp.float32) # (Sq*B, E)
        return out.reshape(Sq, B, E)


# ---------------------------------------------------------------------------
# Pure-JAX f32 reference (mirrors the torch forward) for the correctness check
# ---------------------------------------------------------------------------
def reference_forward(m, query, key, key_padding_mask, attn_mask):
    Sq, B, E = query.shape
    Sk = key.shape[0]
    H, D = m.num_heads, m.head_dim
    q = query.reshape(Sq * B, E) @ m.wq_t + m.bq
    k = key.reshape(Sk * B, E) @ m.wk_t + m.bk
    v = key.reshape(Sk * B, E) @ m.wv_t + m.bv
    qh = q.reshape(Sq, B * H, D).transpose(1, 0, 2) * m.scaling
    kh = k.reshape(Sk, B * H, D).transpose(1, 0, 2)
    vh = v.reshape(Sk, B * H, D).transpose(1, 0, 2)
    mask = attn_mask.astype(bool)[None] | jnp.broadcast_to(
        key_padding_mask.astype(bool).reshape(B, 1, 1, Sk), (B, H, 1, Sk)
    ).reshape(B * H, 1, Sk)
    s = jnp.einsum("bqd,bkd->bqk", qh, kh) + jnp.where(mask, -jnp.inf, 0.0)
    p = jax.nn.softmax(s, axis=-1)
    o = jnp.einsum("bqk,bkd->bqd", p, vh)
    o = o.transpose(1, 0, 2).reshape(Sq, B, E)
    return (o.reshape(Sq * B, E) @ m.wo_t + m.bo).reshape(Sq, B, E)


if __name__ == "__main__":
    embed_dim, num_heads = 32, 4
    seq_len, bsz = 8, 2

    root = jax.random.PRNGKey(0)
    kq, kk, _ = jax.random.split(root, 3)
    query = jax.random.normal(kq, (seq_len, bsz, embed_dim), jnp.float32)
    key = jax.random.normal(kk, (seq_len, bsz, embed_dim), jnp.float32)

    # causal attn_mask (Sq, Sk): True = masked
    attn_mask = jnp.triu(jnp.ones((seq_len, seq_len), dtype=bool), k=1)
    # key_padding_mask (B, Sk): pad last 2 positions of batch element 1
    key_padding_mask = jnp.zeros((bsz, seq_len), dtype=bool)
    key_padding_mask = key_padding_mask.at[1, -2:].set(True)

    model = AttentionPallas(embed_dim, num_heads, bias=True, seed=0)

    out = model(query, key, key_padding_mask=key_padding_mask, attn_mask=attn_mask)
    out = jax.block_until_ready(out)

    ref = reference_forward(model, query, key, key_padding_mask, attn_mask)
    assert out.shape == (seq_len, bsz, embed_dim)
    # bf16 MXU operands (f32 accumulation) + approx reciprocal -> relaxed tol.
    assert jnp.allclose(out, ref, atol=2e-2, rtol=2e-2), "mismatch vs reference"

    print("KERNEL_OK")
</pallas_src>

<mosaic_0001>
module attributes {stable_mosaic.version = 11 : i64} {
  func.func @_matmul_bias_kernel(%arg0: i32, %arg1: memref<16x32xbf16, #tpu.memory_space<vmem>>, %arg2: memref<32x32xbf16, #tpu.memory_space<vmem>>, %arg3: memref<1x32xf32, #tpu.memory_space<vmem>>, %arg4: memref<16x32xbf16, #tpu.memory_space<vmem>>) attributes {dimension_semantics = [#tpu.dimension_semantics<parallel>], iteration_bounds = array<i64: 1>, scalar_prefetch = 0 : i64, scratch_operands = 0 : i64, tpu.core_type = #tpu.core_type<tc>, window_params = [{transform_indices = @transform_0, window_bounds = array<i64: 16, 32>}, {pipeline_mode = #tpu.pipeline_mode<synchronous>, transform_indices = @transform_1, window_bounds = array<i64: 32, 32>}, {pipeline_mode = #tpu.pipeline_mode<synchronous>, transform_indices = @transform_2, window_bounds = array<i64: 1, 32>}, {transform_indices = @transform_3, window_bounds = array<i64: 16, 32>}]} {
    %c0 = arith.constant 0 : index
    %c0_0 = arith.constant 0 : index
    %0 = vector.load %arg1[%c0, %c0_0] : memref<16x32xbf16, #tpu.memory_space<vmem>>, vector<16x32xbf16>
    %c0_1 = arith.constant 0 : index
    %c0_2 = arith.constant 0 : index
    %1 = vector.load %arg2[%c0_1, %c0_2] : memref<32x32xbf16, #tpu.memory_space<vmem>>, vector<32x32xbf16>
    %cst = arith.constant dense<0.000000e+00> : vector<16x32xf32>
    %2 = tpu.matmul %0, %1, %cst {dimension_numbers = #tpu.dot_dimension_numbers<[1], [0], [0], [1], [0, 0, 1, 1], [], []>} : vector<16x32xbf16>, vector<32x32xbf16>, vector<16x32xf32> -> vector<16x32xf32>
    %c0_3 = arith.constant 0 : index
    %c0_4 = arith.constant 0 : index
    %3 = vector.load %arg3[%c0_3, %c0_4] : memref<1x32xf32, #tpu.memory_space<vmem>>, vector<1x32xf32>
    %4 = vector.broadcast %3 : vector<1x32xf32> to vector<16x32xf32>
    %5 = arith.addf %2, %4 : vector<16x32xf32>
    %6 = arith.truncf %5 : vector<16x32xf32> to vector<16x32xbf16>
    %c0_5 = arith.constant 0 : index
    %c0_6 = arith.constant 0 : index
    %7 = vector.load %arg4[%c0_5, %c0_6] : memref<16x32xbf16, #tpu.memory_space<vmem>>, vector<16x32xbf16>
    tpu.vector_store %arg4[%c0_5, %c0_6], %6 {strides = array<i32>} : memref<16x32xbf16, #tpu.memory_space<vmem>>, vector<16x32xbf16>,
    return
  }
  func.func @transform_0(%arg0: i32) -> (i32, i32) {
    %c0_i32 = arith.constant 0 : i32
    %c0_i32_0 = arith.constant 0 : i32
    return %arg0, %c0_i32 : i32, i32
  }
  func.func @transform_1(%arg0: i32) -> (i32, i32) {
    %c0_i32 = arith.constant 0 : i32
    %c0_i32_0 = arith.constant 0 : i32
    %c0_i32_1 = arith.constant 0 : i32
    return %c0_i32, %c0_i32_0 : i32, i32
  }
  func.func @transform_2(%arg0: i32) -> (i32, i32) {
    %c0_i32 = arith.constant 0 : i32
    %c0_i32_0 = arith.constant 0 : i32
    %c0_i32_1 = arith.constant 0 : i32
    return %c0_i32, %c0_i32_0 : i32, i32
  }
  func.func @transform_3(%arg0: i32) -> (i32, i32) {
    %c0_i32 = arith.constant 0 : i32
    %c0_i32_0 = arith.constant 0 : i32
    return %arg0, %c0_i32 : i32, i32
  }
}

</mosaic_0001>

<llo_original>
// kernel: tpu_custom_call.1
$region0: #{tpu_custom_call.1}
  #allocation0 [shape = 'u32[]', space=smem, size = 0x4, offset = 0x4, fixed_abs, tag = 'smem constant byte address 0x4 - core index']
  #allocation1 [shape = 'u32[144,128]{1,0:T(1,128)}', space=vmem, size = 0x12000, scoped, tag = 'internal scratch']
  %s0 = inlined_call_operand.hbm [shape: bf16[16,32], index: 0, kind: input, shape index: {}]
  %s1 = inlined_call_operand.hbm [shape: bf16[32,32], index: 1, kind: input, shape index: {}]
  %s2 = inlined_call_operand.vmem [shape: f32[1,32], index: 2, kind: input, shape index: {}]
  %s3 = inlined_call_operand.hbm [shape: bf16[16,32], index: 3, kind: output, shape index: {}]
  %s4 = sld [smem:[#allocation0]]
  $region30: #{tpu_custom_call.1} parent=0
    _
  %s6 = ssub.s32 1, %s4
  %s7 = scalar_select 0, %s6, %s4
  $region1: #{tpu_custom_call.1} parent=0
    #allocation2 [shape = 'u8[4096]{0}', space=vmem, size = 0x1000, scoped, tag = 'input window, operand 0, single buffered']
    #allocation3 [shape = 's32[1]{0}', space=sflag, size = 0x4, scoped, tag = 'scoped memory for tpu_custom_call.1']
    #allocation4 [shape = 's32[1]{0}', space=sflag, size = 0x4, scoped, tag = 'scoped memory for tpu_custom_call.1']
    #allocation5 [shape = 'u8[8192]{0}', space=vmem, size = 0x2000, scoped, tag = 'input window, operand 1, single buffered']
    #allocation6 [shape = 's32[1]{0}', space=sflag, size = 0x4, scoped, tag = 'scoped memory for tpu_custom_call.1']
    #allocation7 [shape = 'u8[4096]{0}', space=vmem, size = 0x1000, scoped, tag = 'output window, operand 0, single buffered']
    %8 = vsyncpa [#allocation3], 0
    %9 = vsyncpa [#allocation6], 0
    %10 = vsyncpa [#allocation4], 0
    // Predicated region
    $region2: #{tpu_custom_call.1} parent=1 // pred_check
      _
    $region3: #{tpu_custom_call.1} parent=1 // pred_check_branch
      %12 = sbr.rel (0) target = $region5
    $region4: #{tpu_custom_call.1} parent=1 // pred_region
      %s14 = ssub.s32 128, 128
      %15 = vsyncadd [#allocation3], %s14
      %s16 = sshll.u32 [#allocation2], 4
      %s17 = int_to_ptr.vmem [resolvable:$true] %s16
      %22 = dma.hbm_to_vmem [thread:$0]  %s0, 128, %s17, [#allocation3], 64, 64, 4
    $region5: #{tpu_custom_call.1} parent=1 // pred_fallthru
      _
    // Predicated region
    $region6: #{tpu_custom_call.1} parent=1 // pred_check
      _
    $region7: #{tpu_custom_call.1} parent=1 // pred_check_branch
      %24 = sbr.rel (0) target = $region9
    $region8: #{tpu_custom_call.1} parent=1 // pred_region
      %s26 = ssub.s32 256, 256
      %27 = vsyncadd [#allocation6], %s26
      %s28 = sshll.u32 [#allocation5], 4
      %s29 = int_to_ptr.vmem [resolvable:$true] %s28
      %34 = dma.hbm_to_vmem [thread:$0]  %s1, 256, %s29, [#allocation6], 64, 64, 4
    $region9: #{tpu_custom_call.1} parent=1 // pred_fallthru
      _
    // Predicated region
    $region10: #{tpu_custom_call.1} parent=1 // pred_check
      _
    $region11: #{tpu_custom_call.1} parent=1 // pred_check_branch
      %36 = sbr.rel (0) target = $region13
    $region12: #{tpu_custom_call.1} parent=1 // pred_region
      _
    $region13: #{tpu_custom_call.1} parent=1 // pred_fallthru
      _
    // Predicated region
    $region14: #{tpu_custom_call.1} parent=1 // pred_check
      _
    $region15: #{tpu_custom_call.1} parent=1 // pred_check_branch
      %38 = sbr.rel (0) target = $region17
    $region16: #{tpu_custom_call.1} parent=1 // pred_region
      %39 = dma.done [#allocation3], 128
    $region17: #{tpu_custom_call.1} parent=1 // pred_fallthru
      _
    // Predicated region
    $region18: #{tpu_custom_call.1} parent=1 // pred_check
      _
    $region19: #{tpu_custom_call.1} parent=1 // pred_check_branch
      %41 = sbr.rel (0) target = $region21
    $region20: #{tpu_custom_call.1} parent=1 // pred_region
      %42 = dma.done [#allocation6], 256
    $region21: #{tpu_custom_call.1} parent=1 // pred_fallthru
      _
    %v44 = vld [vmem:[#allocation2] sm:$0xf]
    %v45 = vld [vmem:[#allocation2 + $0x4] sm:$0xf]
    %v46 = vld [vmem:[#allocation5] sm:$0xf]
    %v47 = vld [vmem:[#allocation5 + $0x4] sm:$0xf]
    %v48 = vld [vmem:[#allocation5 + $0x8] sm:$0xf]
    %v49 = vld [vmem:[#allocation5 + $0xc] sm:$0xf]
    %v50 = vld [vmem:[%s2] sm:$0x1]
    %v52 = vlaneseq
    %v53 = vshrl.u32 %v52, 7
    %v54 = vsub.s32 0, %v53
    %v55 = vrot.slane %v50, %v54
    %v59 = vunpack.c.l.b16 %v44
    %v60 = vunpack.c.l.b16 %v45
    %v61 = vpack.c.b16 %v60, %v59
    %v66 = vunpack.c.l.b16 %v46
    %v67 = vunpack.c.l.b16 %v47
    %v68 = vunpack.c.l.b16 %v48
    %v69 = vunpack.c.l.b16 %v49
    %v70 = vpack.c.b16 %v67, %v66
    %v71 = vpack.c.b16 %v69, %v68
    %vm74 = vcmask 261120
    %v76 = vsel %vm74, %v61, 0
    %78 = vmatprep.subr.bf16.mxu0 0
    %79 = vmatpush1.bf16.msra.mxu0 0
    %80 = vmatprep.subr.bf16.mxu0 0
    %81 = vmatpush1.bf16.msra.mxu0 0
    %82 = vmatprep.subr.bf16.mxu0 0
    %83 = vmatpush1.bf16.msra.mxu0 0
    %84 = vmatprep.subr.bf16.mxu0 0
    %85 = vmatpush1.bf16.msra.mxu0 0
    %86 = vmatprep.subr.bf16.mxu0 0
    %87 = vmatpush1.bf16.msra.mxu0 0
    %88 = vmatprep.subr.bf16.mxu0 0
    %89 = vmatpush1.bf16.msra.mxu0 0
    %90 = vmatprep.subr.bf16.mxu0 0
    %91 = vmatpush1.bf16.msra.mxu0 %v71
    %92 = vmatprep.subr.bf16.mxu0 0
    %93 = vmatpush1.bf16.msra.mxu0 %v70
    %94 = vmatprep.subr.bf16.mxu0 0
    %95 = vmatpush2.bf16.msra.mxu0 0
    %96 = vmatprep.subr.bf16.mxu0 0
    %97 = vmatpush2.bf16.msra.mxu0 0
    %98 = vmatprep.subr.bf16.mxu0 0
    %99 = vmatpush2.bf16.msra.mxu0 0
    %100 = vmatprep.subr.bf16.mxu0 0
    %101 = vmatpush2.bf16.msra.mxu0 0
    %102 = vmatprep.subr.bf16.mxu0 0
    %103 = vmatpush2.bf16.msra.mxu0 0
    %104 = vmatprep.subr.bf16.mxu0 0
    %105 = vmatpush2.bf16.msra.mxu0 0
    %106 = vmatprep.subr.bf16.mxu0 0
    %107 = vmatpush2.bf16.msra.mxu0 0
    %108 = vmatprep.subr.bf16.mxu0 0
    %109 = vmatpush2.bf16.msra.mxu0 0
    %110 = vmatprep.mubr.bf16.mxu0 0
    %111 = vmatmul.mubr.bf16.gmra.mxu0 %v76
    %v112 = vpop.f32.mrf.mxu0
    %v113 = vadd.f32 %v55, %v112
    %v114 = vpop.f32.mrf.mxu0
    %v115 = vpop.f32.mrf.mxu0
    %v116 = vadd.f32 %v55, %v115
    %v117 = vpop.f32.mrf.mxu0
    %118 = vdwg.mxu0
    %v119 = vpack.c.bf16 %v116, %v113
    %v121 = vunpack.c.l.b16 %v119
    %v122 = vunpack.c.h.b16 %v119
    %v123 = vpack.c.b16 %v121, %v121
    %v124 = vpack.c.b16 %v122, %v122
    %vm127 = vcmask 257024
    %128 = vst.msk [vmem:[#allocation7] sm:$0xf] %vm127, %v123
    %129 = vst.msk [vmem:[#allocation7 + $0x4] sm:$0xf] %vm127, %v124
    // Predicated region
    $region22: #{tpu_custom_call.1} parent=1 // pred_check
      _
    $region23: #{tpu_custom_call.1} parent=1 // pred_check_branch
      %131 = sbr.rel (0) target = $region25
    $region24: #{tpu_custom_call.1} parent=1 // pred_region
      %s133 = ssub.s32 128, 128
      %134 = vsyncadd [#allocation4], %s133
      %s135 = sshll.u32 [#allocation7], 4
      %s136 = int_to_ptr.vmem [resolvable:$true] %s135
      %141 = dma.vmem_to_hbm [thread:$0]  %s136, 128, %s3, [#allocation4], 64, 64, 4
    $region25: #{tpu_custom_call.1} parent=1 // pred_fallthru
      _
    // Predicated region
    $region26: #{tpu_custom_call.1} parent=1 // pred_check
      _
    $region27: #{tpu_custom_call.1} parent=1 // pred_check_branch
      %143 = sbr.rel (0) target = $region29
    $region28: #{tpu_custom_call.1} parent=1 // pred_region
      %144 = dma.done [#allocation4], 128
    $region29: #{tpu_custom_call.1} parent=1 // pred_fallthru
      _
    %145 = vsyncpa [#allocation3], 1
    %146 = vsyncpa [#allocation6], 1
    %147 = vsyncpa [#allocation4], 1

</llo_original>
